<compile_context>
chip_gen: v7x
topology: tpu7x:2x2x1
jax: 0.10.0
libtpu: 0.0.40
codegen_flags: <defaults>
</compile_context>

<pallas_src>
import jax
import jax.numpy as jnp
from jax.experimental import pallas as pl
from jax.experimental.pallas import tpu as pltpu  # noqa: F401  (kept for tuning hooks)


# -------------------- Pallas kernel (fully fused Enblock) --------------------

def _make_enblock_kernel(n_blocks, K):
    """Builds kernel(x, L, D, w0, b0, ..., w_{n-1}, b_{n-1}, out)."""

    def kernel(x_ref, l_ref, d_ref, *refs):
        o_ref = refs[-1]
        wb_refs = refs[:-1]                              # (w0, b0, w1, b1, ...)

        L = l_ref[...].astype(jnp.float32)               # [N, N]
        act = x_ref[...].astype(jnp.float32)             # [N, B*Cin]

        for i in range(n_blocks):                        # static unroll over blocks
            w = wb_refs[2 * i][...]                      # [K*B*Cin_i, B*Cout]
            b = wb_refs[2 * i + 1][...]                  # [1, B*Cout]

            # Chebyshev recursion: T_0 = x, T_1 = L x, T_k = 2 L T_{k-1} - T_{k-2}.
            # Each step is one wide matmul for every batch element at once.
            tx_prev = act
            txs = [tx_prev]
            if K > 1:
                tx_cur = jnp.dot(L, tx_prev, preferred_element_type=jnp.float32)
                txs.append(tx_cur)
                for _ in range(2, K):                    # static unroll over order
                    tx_next = (2.0 * jnp.dot(L, tx_cur,
                                             preferred_element_type=jnp.float32)
                               - tx_prev)
                    txs.append(tx_next)
                    tx_prev, tx_cur = tx_cur, tx_next

            # One MXU contraction over (K, Cin) instead of K skinny matmuls.
            slab = jnp.concatenate(txs, axis=-1)         # [N, K*B*Cin_i]
            act = jnp.dot(slab, w, preferred_element_type=jnp.float32) + b

        # ELU (alpha=1). Clamp the exp argument so the discarded branch never
        # produces inf (exp only goes to the EUP slot, essentially free here).
        neg = jnp.minimum(act, 0.0)
        y = jnp.where(act > 0.0, act, jnp.exp(neg) - 1.0)

        # Pool: out = D @ elu(x), fused into the same kernel epilogue.
        o_ref[...] = jnp.dot(d_ref[...], y,
                             preferred_element_type=jnp.float32).astype(o_ref.dtype)

    return kernel


# -------------------- wrapper --------------------

def enblock_forward(x, L_hat, weights, biases, down_dense):
    """Enblock.forward: n ChebConv blocks -> ELU -> Pool, as one fused Pallas call."""
    B, N, Cin = x.shape
    K, _, Cout = weights[0].shape
    M = down_dense.shape[0]
    n_blocks = len(weights)

    # Fold batch into lanes: [B, N, C] -> [N, B*C].
    x_t = jnp.transpose(x, (1, 0, 2)).reshape(N, B * Cin)

    # For each block, build a batch-block-diagonal flattened weight
    #   W_bd[(k, b, c), (b', o)] = W[k, c, o] * (b == b')
    # so one matmul against the [N, K*B*Cin] slab applies W to every batch element,
    # and tile the bias to [1, B*Cout] (lane layout is (batch, channel)).
    eye_b = jnp.eye(B, dtype=x.dtype)
    flat_params = []
    for w, b in zip(weights, biases):
        k_i, cin_i, cout_i = w.shape
        w_bd = jnp.einsum("kco,bp->kbcpo", w, eye_b).reshape(k_i * B * cin_i,
                                                             B * cout_i)
        b_t = jnp.tile(b.reshape(1, cout_i), (1, B))
        flat_params += [w_bd, b_t]

    out_flat = pl.pallas_call(
        _make_enblock_kernel(n_blocks, K),
        out_shape=jax.ShapeDtypeStruct((M, B * Cout), x.dtype),
        # No grid: the whole (small) problem lives in VMEM, every operand is loaded
        # exactly once, and the only HBM write is the final pooled result.
    )(x_t, L_hat, down_dense, *flat_params)

    # [M, B*Cout] -> [B, M, Cout]
    return jnp.transpose(out_flat.reshape(M, B, Cout), (1, 0, 2))


# -------------------- glue: graph / parameter construction --------------------

def build_scaled_laplacian(edge_index, num_nodes):
    """Dense L_hat = 2L/lambda_max - I with lambda_max=2 => -D^{-1/2} A D^{-1/2}."""
    row, col = edge_index
    A = jnp.zeros((num_nodes, num_nodes), jnp.float32).at[row, col].add(1.0)
    deg = A.sum(axis=1)
    d_inv_sqrt = jnp.where(deg > 0, 1.0 / jnp.sqrt(deg), 0.0)
    return -(d_inv_sqrt[:, None] * A * d_inv_sqrt[None, :])


def xavier_uniform(key, shape):
    # PyTorch fan computation for a [K, Cin, Cout] tensor: fan_in = Cin*Cout, fan_out = K*Cout
    K, Cin, Cout = shape
    fan_in, fan_out = Cin * Cout, K * Cout
    a = (6.0 / (fan_in + fan_out)) ** 0.5
    return jax.random.uniform(key, shape, jnp.float32, -a, a)


# -------------------- reference (pure JAX, mirrors the per-block structure) ----

def _reference(x, L_hat, weights, biases, down_dense):
    for w, b in zip(weights, biases):
        K = w.shape[0]
        tx0, out = x, jnp.einsum("bni,io->bno", x, w[0])
        if K > 1:
            tx1 = jnp.einsum("mn,bni->bmi", L_hat, tx0)
            out = out + jnp.einsum("bni,io->bno", tx1, w[1])
            for k in range(2, K):
                tx2 = 2.0 * jnp.einsum("mn,bni->bmi", L_hat, tx1) - tx0
                out = out + jnp.einsum("bni,io->bno", tx2, w[k])
                tx0, tx1 = tx1, tx2
        x = out + b
    y = jnp.where(x > 0, x, jnp.exp(jnp.minimum(x, 0.0)) - 1.0)
    return jnp.einsum("mn,bnc->bmc", down_dense, y)


# -------------------- main --------------------

if __name__ == "__main__":
    B, N, Cin, Cout, K, M, n_blocks = 2, 16, 4, 8, 3, 8, 2

    key = jax.random.PRNGKey(0)
    kx, *kw = jax.random.split(key, 1 + n_blocks)

    # Input features [B, N, Cin]
    x = jax.random.normal(kx, (B, N, Cin), jnp.float32)

    # Ring graph over N nodes (symmetric edge_index).
    idx = jnp.arange(N)
    src = jnp.concatenate([idx, (idx + 1) % N])
    dst = jnp.concatenate([(idx + 1) % N, idx])
    edge_index = jnp.stack([src, dst])
    L_hat = build_scaled_laplacian(edge_index, N)

    # ChebConv parameters (xavier_uniform weights, zero biases) per block.
    weights, biases = [], []
    for i in range(n_blocks):
        cin_i = Cin if i == 0 else Cout
        weights.append(xavier_uniform(kw[i], (K, cin_i, Cout)))
        biases.append(jnp.zeros((1, Cout), jnp.float32))

    # Sparse down_transform [M, N]: each coarse node averages two fine nodes.
    down_dense = (
        jnp.zeros((M, N), jnp.float32)
        .at[jnp.arange(M), 2 * jnp.arange(M)].set(0.5)
        .at[jnp.arange(M), 2 * jnp.arange(M) + 1].set(0.5)
    )

    out = enblock_forward(x, L_hat, weights, biases, down_dense)
    out = jax.block_until_ready(out)

    ref = _reference(x, L_hat, weights, biases, down_dense)
    assert out.shape == (B, M, Cout)
    assert jnp.allclose(out, ref, atol=1e-5, rtol=1e-5), "mismatch vs pure-JAX reference"

    print("KERNEL_OK")
</pallas_src>

<mosaic_0001>
module attributes {stable_mosaic.version = 11 : i64} {
  func.func @kernel(%arg0: memref<16x8xf32, #tpu.memory_space<vmem>>, %arg1: memref<16x16xf32, #tpu.memory_space<vmem>>, %arg2: memref<8x16xf32, #tpu.memory_space<vmem>>, %arg3: memref<24x16xf32, #tpu.memory_space<vmem>>, %arg4: memref<1x16xf32, #tpu.memory_space<vmem>>, %arg5: memref<48x16xf32, #tpu.memory_space<vmem>>, %arg6: memref<1x16xf32, #tpu.memory_space<vmem>>, %arg7: memref<8x16xf32, #tpu.memory_space<vmem>>) attributes {dimension_semantics = [], scalar_prefetch = 0 : i64, scratch_operands = 0 : i64, tpu.core_type = #tpu.core_type<tc>} {
    %c0 = arith.constant 0 : index
    %c0_0 = arith.constant 0 : index
    %0 = vector.load %arg1[%c0, %c0_0] : memref<16x16xf32, #tpu.memory_space<vmem>>, vector<16x16xf32>
    %c0_1 = arith.constant 0 : index
    %c0_2 = arith.constant 0 : index
    %1 = vector.load %arg0[%c0_1, %c0_2] : memref<16x8xf32, #tpu.memory_space<vmem>>, vector<16x8xf32>
    %c0_3 = arith.constant 0 : index
    %c0_4 = arith.constant 0 : index
    %2 = vector.load %arg3[%c0_3, %c0_4] : memref<24x16xf32, #tpu.memory_space<vmem>>, vector<24x16xf32>
    %c0_5 = arith.constant 0 : index
    %c0_6 = arith.constant 0 : index
    %3 = vector.load %arg4[%c0_5, %c0_6] : memref<1x16xf32, #tpu.memory_space<vmem>>, vector<1x16xf32>
    %cst = arith.constant dense<0.000000e+00> : vector<16x8xf32>
    %4 = tpu.matmul %0, %1, %cst {dimension_numbers = #tpu.dot_dimension_numbers<[1], [0], [0], [1], [0, 0, 1, 1], [], []>} : vector<16x16xf32>, vector<16x8xf32>, vector<16x8xf32> -> vector<16x8xf32>
    %cst_7 = arith.constant dense<0.000000e+00> : vector<16x8xf32>
    %5 = tpu.matmul %0, %4, %cst_7 {dimension_numbers = #tpu.dot_dimension_numbers<[1], [0], [0], [1], [0, 0, 1, 1], [], []>} : vector<16x16xf32>, vector<16x8xf32>, vector<16x8xf32> -> vector<16x8xf32>
    %cst_8 = arith.constant 2.000000e+00 : f32
    %6 = vector.broadcast %cst_8 : f32 to vector<16x8xf32>
    %7 = arith.mulf %6, %5 : vector<16x8xf32>
    %8 = arith.subf %7, %1 : vector<16x8xf32>
    %9 = tpu.concatenate %1, %4, %8 in 1 : vector<16x8xf32>, vector<16x8xf32>, vector<16x8xf32> -> vector<16x24xf32>
    %cst_9 = arith.constant dense<0.000000e+00> : vector<16x16xf32>
    %10 = tpu.matmul %9, %2, %cst_9 {dimension_numbers = #tpu.dot_dimension_numbers<[1], [0], [0], [1], [0, 0, 1, 1], [], []>} : vector<16x24xf32>, vector<24x16xf32>, vector<16x16xf32> -> vector<16x16xf32>
    %11 = vector.broadcast %3 : vector<1x16xf32> to vector<16x16xf32>
    %12 = arith.addf %10, %11 : vector<16x16xf32>
    %c0_10 = arith.constant 0 : index
    %c0_11 = arith.constant 0 : index
    %13 = vector.load %arg5[%c0_10, %c0_11] : memref<48x16xf32, #tpu.memory_space<vmem>>, vector<48x16xf32>
    %c0_12 = arith.constant 0 : index
    %c0_13 = arith.constant 0 : index
    %14 = vector.load %arg6[%c0_12, %c0_13] : memref<1x16xf32, #tpu.memory_space<vmem>>, vector<1x16xf32>
    %cst_14 = arith.constant dense<0.000000e+00> : vector<16x16xf32>
    %15 = tpu.matmul %0, %12, %cst_14 {dimension_numbers = #tpu.dot_dimension_numbers<[1], [0], [0], [1], [0, 0, 1, 1], [], []>} : vector<16x16xf32>, vector<16x16xf32>, vector<16x16xf32> -> vector<16x16xf32>
    %cst_15 = arith.constant dense<0.000000e+00> : vector<16x16xf32>
    %16 = tpu.matmul %0, %15, %cst_15 {dimension_numbers = #tpu.dot_dimension_numbers<[1], [0], [0], [1], [0, 0, 1, 1], [], []>} : vector<16x16xf32>, vector<16x16xf32>, vector<16x16xf32> -> vector<16x16xf32>
    %cst_16 = arith.constant 2.000000e+00 : f32
    %17 = vector.broadcast %cst_16 : f32 to vector<16x16xf32>
    %18 = arith.mulf %17, %16 : vector<16x16xf32>
    %19 = arith.subf %18, %12 : vector<16x16xf32>
    %20 = tpu.concatenate %12, %15, %19 in 1 : vector<16x16xf32>, vector<16x16xf32>, vector<16x16xf32> -> vector<16x48xf32>
    %cst_17 = arith.constant dense<0.000000e+00> : vector<16x16xf32>
    %21 = tpu.matmul %20, %13, %cst_17 {dimension_numbers = #tpu.dot_dimension_numbers<[1], [0], [0], [1], [0, 0, 1, 1], [], []>} : vector<16x48xf32>, vector<48x16xf32>, vector<16x16xf32> -> vector<16x16xf32>
    %22 = vector.broadcast %14 : vector<1x16xf32> to vector<16x16xf32>
    %23 = arith.addf %21, %22 : vector<16x16xf32>
    %cst_18 = arith.constant 0.000000e+00 : f32
    %24 = vector.broadcast %cst_18 : f32 to vector<16x16xf32>
    %25 = arith.minimumf %23, %24 : vector<16x16xf32>
    %cst_19 = arith.constant 0.000000e+00 : f32
    %26 = vector.broadcast %cst_19 : f32 to vector<16x16xf32>
    %27 = arith.cmpf ogt, %23, %26 : vector<16x16xf32>
    %28 = math.exp %25 : vector<16x16xf32>
    %cst_20 = arith.constant 1.000000e+00 : f32
    %29 = vector.broadcast %cst_20 : f32 to vector<16x16xf32>
    %30 = arith.subf %28, %29 : vector<16x16xf32>
    %31 = arith.select %27, %23, %30 : vector<16x16xi1>, vector<16x16xf32>
    %c0_21 = arith.constant 0 : index
    %c0_22 = arith.constant 0 : index
    %32 = vector.load %arg2[%c0_21, %c0_22] : memref<8x16xf32, #tpu.memory_space<vmem>>, vector<8x16xf32>
    %cst_23 = arith.constant dense<0.000000e+00> : vector<8x16xf32>
    %33 = tpu.matmul %32, %31, %cst_23 {dimension_numbers = #tpu.dot_dimension_numbers<[1], [0], [0], [1], [0, 0, 1, 1], [], []>} : vector<8x16xf32>, vector<16x16xf32>, vector<8x16xf32> -> vector<8x16xf32>
    %c0_24 = arith.constant 0 : index
    %c0_25 = arith.constant 0 : index
    %34 = vector.load %arg7[%c0_24, %c0_25] : memref<8x16xf32, #tpu.memory_space<vmem>>, vector<8x16xf32>
    tpu.vector_store %arg7[%c0_24, %c0_25], %33 {strides = array<i32>} : memref<8x16xf32, #tpu.memory_space<vmem>>, vector<8x16xf32>,
    return
  }
}

</mosaic_0001>

<llo_original>
// kernel: tpu_custom_call.1
$region0: #{tpu_custom_call.1}
  #allocation0 [shape = 'u32[]', space=smem, size = 0x4, offset = 0x4, fixed_abs, tag = 'smem constant byte address 0x4 - core index']
  #allocation1 [shape = 'u32[144,128]{1,0:T(1,128)}', space=vmem, size = 0x12000, scoped, tag = 'internal scratch']
  %s0 = inlined_call_operand.vmem [shape: f32[16,8], index: 0, kind: input, shape index: {}]
  %s1 = inlined_call_operand.vmem [shape: f32[16,16], index: 1, kind: input, shape index: {}]
  %s2 = inlined_call_operand.vmem [shape: f32[8,16], index: 2, kind: input, shape index: {}]
  %s3 = inlined_call_operand.vmem [shape: f32[24,16], index: 3, kind: input, shape index: {}]
  %s4 = inlined_call_operand.vmem [shape: f32[1,16], index: 4, kind: input, shape index: {}]
  %s5 = inlined_call_operand.vmem [shape: f32[48,16], index: 5, kind: input, shape index: {}]
  %s6 = inlined_call_operand.vmem [shape: f32[1,16], index: 6, kind: input, shape index: {}]
  %s7 = inlined_call_operand.hbm [shape: f32[8,16], index: 7, kind: output, shape index: {}]
  %s8 = sld [smem:[#allocation0]]
  $region38: #{tpu_custom_call.1} parent=0
    _
  %s10 = ssub.s32 1, %s8
  %s11 = scalar_select 0, %s10, %s8
  $region1: #{tpu_custom_call.1} parent=0
    #allocation2 [shape = 'u8[4096]{0}', space=vmem, size = 0x1000, scoped, tag = 'output window, operand 0, single buffered']
    #allocation3 [shape = 's32[1]{0}', space=sflag, size = 0x4, scoped, tag = 'scoped memory for tpu_custom_call.1']
    %12 = vsyncpa [#allocation3], 0
    // Predicated region
    $region2: #{tpu_custom_call.1} parent=1 // pred_check
      _
    $region3: #{tpu_custom_call.1} parent=1 // pred_check_branch
      %14 = sbr.rel (0) target = $region5
    $region4: #{tpu_custom_call.1} parent=1 // pred_region
      _
    $region5: #{tpu_custom_call.1} parent=1 // pred_fallthru
      _
    // Predicated region
    $region6: #{tpu_custom_call.1} parent=1 // pred_check
      _
    $region7: #{tpu_custom_call.1} parent=1 // pred_check_branch
      %16 = sbr.rel (0) target = $region9
    $region8: #{tpu_custom_call.1} parent=1 // pred_region
      _
    $region9: #{tpu_custom_call.1} parent=1 // pred_fallthru
      _
    // Predicated region
    $region10: #{tpu_custom_call.1} parent=1 // pred_check
      _
    $region11: #{tpu_custom_call.1} parent=1 // pred_check_branch
      %18 = sbr.rel (0) target = $region13
    $region12: #{tpu_custom_call.1} parent=1 // pred_region
      _
    $region13: #{tpu_custom_call.1} parent=1 // pred_fallthru
      _
    // Predicated region
    $region14: #{tpu_custom_call.1} parent=1 // pred_check
      _
    $region15: #{tpu_custom_call.1} parent=1 // pred_check_branch
      %20 = sbr.rel (0) target = $region17
    $region16: #{tpu_custom_call.1} parent=1 // pred_region
      _
    $region17: #{tpu_custom_call.1} parent=1 // pred_fallthru
      _
    // Predicated region
    $region18: #{tpu_custom_call.1} parent=1 // pred_check
      _
    $region19: #{tpu_custom_call.1} parent=1 // pred_check_branch
      %22 = sbr.rel (0) target = $region21
    $region20: #{tpu_custom_call.1} parent=1 // pred_region
      _
    $region21: #{tpu_custom_call.1} parent=1 // pred_fallthru
      _
    // Predicated region
    $region22: #{tpu_custom_call.1} parent=1 // pred_check
      _
    $region23: #{tpu_custom_call.1} parent=1 // pred_check_branch
      %24 = sbr.rel (0) target = $region25
    $region24: #{tpu_custom_call.1} parent=1 // pred_region
      _
    $region25: #{tpu_custom_call.1} parent=1 // pred_fallthru
      _
    // Predicated region
    $region26: #{tpu_custom_call.1} parent=1 // pred_check
      _
    $region27: #{tpu_custom_call.1} parent=1 // pred_check_branch
      %26 = sbr.rel (0) target = $region29
    $region28: #{tpu_custom_call.1} parent=1 // pred_region
      _
    $region29: #{tpu_custom_call.1} parent=1 // pred_fallthru
      _
    %v27 = vld [vmem:[%s1] sm:$0xff]
    %v28 = vld [vmem:[%s1 + $0x8] sm:$0xff]
    %v29 = vld [vmem:[%s0] sm:$0xff]
    %v30 = vld [vmem:[%s0 + $0x8] sm:$0xff]
    %v31 = vld [vmem:[%s3] sm:$0xff]
    %v32 = vld [vmem:[%s3 + $0x8] sm:$0xff]
    %v33 = vld [vmem:[%s3 + $0x10] sm:$0xff]
    %v34 = vld [vmem:[%s4] sm:$0x1]
    %vm35 = vcmask 130048
    %v37 = vsel %vm35, %v27, 0
    %v40 = vsel %vm35, %v28, 0
    %42 = vmatprep.subr.mxu0 0.0
    %43 = vmatpush1.msra.mxu0 %v29
    %44 = vmatprep.subr.mxu0 0.0
    %45 = vmatpush1.msra.mxu0 %v30
    %46 = vmatprep.subr.mxu0 0.0
    %47 = vmatpush1.msra.mxu0 0.0
    %48 = vmatprep.subr.mxu0 0.0
    %49 = vmatpush1.msra.mxu0 0.0
    %50 = vmatprep.subr.mxu0 0.0
    %51 = vmatpush1.msra.mxu0 0.0
    %52 = vmatprep.subr.mxu0 0.0
    %53 = vmatpush1.msra.mxu0 0.0
    %54 = vmatprep.subr.mxu0 0.0
    %55 = vmatpush1.msra.mxu0 0.0
    %56 = vmatprep.subr.mxu0 0.0
    %57 = vmatpush1.msra.mxu0 0.0
    %58 = vmatprep.subr.mxu0 0.0
    %59 = vmatpush1.msra.mxu0 0.0
    %60 = vmatprep.subr.mxu0 0.0
    %61 = vmatpush1.msra.mxu0 0.0
    %62 = vmatprep.subr.mxu0 0.0
    %63 = vmatpush1.msra.mxu0 0.0
    %64 = vmatprep.subr.mxu0 0.0
    %65 = vmatpush1.msra.mxu0 0.0
    %66 = vmatprep.subr.mxu0 0.0
    %67 = vmatpush1.msra.mxu0 0.0
    %68 = vmatprep.subr.mxu0 0.0
    %69 = vmatpush1.msra.mxu0 0.0
    %70 = vmatprep.subr.mxu0 0.0
    %71 = vmatpush1.msra.mxu0 0.0
    %72 = vmatprep.subr.mxu0 0.0
    %73 = vmatpush1.msra.mxu0 0.0
    %74 = vmatprep.subr.mxu0 0.0
    %75 = vmatpush1.msra.mxu0 0.0
    %76 = vmatprep.subr.mxu0 0.0
    %77 = vmatpush1.msra.mxu0 0.0
    %78 = vmatprep.subr.mxu0 0.0
    %79 = vmatpush1.msra.mxu0 0.0
    %80 = vmatprep.subr.mxu0 0.0
    %81 = vmatpush1.msra.mxu0 0.0
    %82 = vmatprep.subr.mxu0 0.0
    %83 = vmatpush1.msra.mxu0 0.0
    %84 = vmatprep.subr.mxu0 0.0
    %85 = vmatpush1.msra.mxu0 0.0
    %86 = vmatprep.subr.mxu0 0.0
    %87 = vmatpush1.msra.mxu0 0.0
    %88 = vmatprep.subr.mxu0 0.0
    %89 = vmatpush1.msra.mxu0 0.0
    %90 = vmatprep.subr.mxu0 0.0
    %91 = vmatpush1.msra.mxu0 0.0
    %92 = vmatprep.subr.mxu0 0.0
    %93 = vmatpush1.msra.mxu0 0.0
    %94 = vmatprep.subr.mxu0 0.0
    %95 = vmatpush1.msra.mxu0 0.0
    %96 = vmatprep.subr.mxu0 0.0
    %97 = vmatpush1.msra.mxu0 0.0
    %98 = vmatprep.subr.mxu0 0.0
    %99 = vmatpush1.msra.mxu0 0.0
    %100 = vmatprep.subr.mxu0 0.0
    %101 = vmatpush1.msra.mxu0 0.0
    %102 = vmatprep.subr.mxu0 0.0
    %103 = vmatpush1.msra.mxu0 0.0
    %104 = vmatprep.subr.mxu0 0.0
    %105 = vmatpush1.msra.mxu0 0.0
    %106 = vmatprep.mubr.f32.mxu0 0.0
    %107 = vmatmul.mubr.f32.gmra.mrb[0].mxu0 %v37
    %v108 = vpop.f32.mrb[0].mxu0
    %v109 = vadd.f32 0.0, %v108
    %v110 = vpop.f32.mrb[0].mxu0
    %111 = vmatprep.mubr.f32.mxu0 0.0
    %112 = vmatmul.mubr.f32.gmra.mrb[0].mxu0 %v40
    %v113 = vpop.f32.mrb[0].mxu0
    %v114 = vadd.f32 0.0, %v113
    %v115 = vpop.f32.mrb[0].mxu0
    %116 = vdwg.mxu0
    %117 = vmatprep.subr.mxu0 0.0
    %118 = vmatpush1.msra.mxu0 %v109
    %119 = vmatprep.subr.mxu0 0.0
    %120 = vmatpush1.msra.mxu0 %v114
    %121 = vmatprep.subr.mxu0 0.0
    %122 = vmatpush1.msra.mxu0 0.0
    %123 = vmatprep.subr.mxu0 0.0
    %124 = vmatpush1.msra.mxu0 0.0
    %125 = vmatprep.subr.mxu0 0.0
    %126 = vmatpush1.msra.mxu0 0.0
    %127 = vmatprep.subr.mxu0 0.0
    %128 = vmatpush1.msra.mxu0 0.0
    %129 = vmatprep.subr.mxu0 0.0
    %130 = vmatpush1.msra.mxu0 0.0
    %131 = vmatprep.subr.mxu0 0.0
    %132 = vmatpush1.msra.mxu0 0.0
    %133 = vmatprep.subr.mxu0 0.0
    %134 = vmatpush1.msra.mxu0 0.0
    %135 = vmatprep.subr.mxu0 0.0
    %136 = vmatpush1.msra.mxu0 0.0
    %137 = vmatprep.subr.mxu0 0.0
    %138 = vmatpush1.msra.mxu0 0.0
    %139 = vmatprep.subr.mxu0 0.0
    %140 = vmatpush1.msra.mxu0 0.0
    %141 = vmatprep.subr.mxu0 0.0
    %142 = vmatpush1.msra.mxu0 0.0
    %143 = vmatprep.subr.mxu0 0.0
    %144 = vmatpush1.msra.mxu0 0.0
    %145 = vmatprep.subr.mxu0 0.0
    %146 = vmatpush1.msra.mxu0 0.0
    %147 = vmatprep.subr.mxu0 0.0
    %148 = vmatpush1.msra.mxu0 0.0
    %149 = vmatprep.subr.mxu0 0.0
    %150 = vmatpush1.msra.mxu0 0.0
    %151 = vmatprep.subr.mxu0 0.0
    %152 = vmatpush1.msra.mxu0 0.0
    %153 = vmatprep.subr.mxu0 0.0
    %154 = vmatpush1.msra.mxu0 0.0
    %155 = vmatprep.subr.mxu0 0.0
    %156 = vmatpush1.msra.mxu0 0.0
    %157 = vmatprep.subr.mxu0 0.0
    %158 = vmatpush1.msra.mxu0 0.0
    %159 = vmatprep.subr.mxu0 0.0
    %160 = vmatpush1.msra.mxu0 0.0
    %161 = vmatprep.subr.mxu0 0.0
    %162 = vmatpush1.msra.mxu0 0.0
    %163 = vmatprep.subr.mxu0 0.0
    %164 = vmatpush1.msra.mxu0 0.0
    %165 = vmatprep.subr.mxu0 0.0
    %166 = vmatpush1.msra.mxu0 0.0
    %167 = vmatprep.subr.mxu0 0.0
    %168 = vmatpush1.msra.mxu0 0.0
    %169 = vmatprep.subr.mxu0 0.0
    %170 = vmatpush1.msra.mxu0 0.0
    %171 = vmatprep.subr.mxu0 0.0
    %172 = vmatpush1.msra.mxu0 0.0
    %173 = vmatprep.subr.mxu0 0.0
    %174 = vmatpush1.msra.mxu0 0.0
    %175 = vmatprep.subr.mxu0 0.0
    %176 = vmatpush1.msra.mxu0 0.0
    %177 = vmatprep.subr.mxu0 0.0
    %178 = vmatpush1.msra.mxu0 0.0
    %179 = vmatprep.subr.mxu0 0.0
    %180 = vmatpush1.msra.mxu0 0.0
    %181 = vmatprep.mubr.f32.mxu0 0.0
    %182 = vmatmul.mubr.f32.gmra.mrb[0].mxu0 %v37
    %v183 = vpop.f32.mrb[0].mxu0
    %v184 = vadd.f32 0.0, %v183
    %v185 = vpop.f32.mrb[0].mxu0
    %186 = vmatprep.mubr.f32.mxu0 0.0
    %187 = vmatmul.mubr.f32.gmra.mrb[0].mxu0 %v40
    %v188 = vpop.f32.mrb[0].mxu0
    %v189 = vadd.f32 0.0, %v188
    %v190 = vpop.f32.mrb[0].mxu0
    %191 = vdwg.mxu0
    %v192 = vmul.f32 %v184, 2.0
    %v193 = vmul.f32 %v189, 2.0
    %v194 = vsub.f32 %v192, %v29
    %v195 = vsub.f32 %v193, %v30
    %198 = vrot.lane.b32.xlu0 %v109, 8
    %v199 = vpop.permute.xlu0 %198
    %200 = vrot.lane.b32.xlu0 %v114, 8
    %v201 = vpop.permute.xlu0 %200
    %206 = vrot.lane.b32.xlu0 %v194, 16
    %v207 = vpop.permute.xlu0 %206
    %208 = vrot.lane.b32.xlu0 %v195, 16
    %v209 = vpop.permute.xlu0 %208
    %vm212 = vcmask 64512
    %v213 = vsel %vm212, %v29, %v199
    %v214 = vsel %vm212, %v30, %v201
    %v215 = vsel %vm35, %v213, %v207
    %v216 = vsel %vm35, %v214, %v209
    %v218 = vlaneseq
    %v219 = vshrl.u32 %v218, 7
    %v220 = vsub.s32 0, %v219
    %v221 = vrot.slane %v34, %v220
    %vm223 = vcmask 195584
    %v225 = vsel %vm223, %v215, 0
    %v228 = vsel %vm223, %v216, 0
    %230 = vmatprep.subr.mxu0 0.0
    %231 = vmatpush1.msra.mxu0 %v31
    %232 = vmatprep.subr.mxu0 0.0
    %233 = vmatpush1.msra.mxu0 %v32
    %234 = vmatprep.subr.mxu0 0.0
    %235 = vmatpush1.msra.mxu0 %v33
    %236 = vmatprep.subr.mxu0 0.0
    %237 = vmatpush1.msra.mxu0 0.0
    %238 = vmatprep.subr.mxu0 0.0
    %239 = vmatpush1.msra.mxu0 0.0
    %240 = vmatprep.subr.mxu0 0.0
    %241 = vmatpush1.msra.mxu0 0.0
    %242 = vmatprep.subr.mxu0 0.0
    %243 = vmatpush1.msra.mxu0 0.0
    %244 = vmatprep.subr.mxu0 0.0
    %245 = vmatpush1.msra.mxu0 0.0
    %246 = vmatprep.subr.mxu0 0.0
    %247 = vmatpush1.msra.mxu0 0.0
    %248 = vmatprep.subr.mxu0 0.0
    %249 = vmatpush1.msra.mxu0 0.0
    %250 = vmatprep.subr.mxu0 0.0
    %251 = vmatpush1.msra.mxu0 0.0
    %252 = vmatprep.subr.mxu0 0.0
    %253 = vmatpush1.msra.mxu0 0.0
    %254 = vmatprep.subr.mxu0 0.0
    %255 = vmatpush1.msra.mxu0 0.0
    %256 = vmatprep.subr.mxu0 0.0
    %257 = vmatpush1.msra.mxu0 0.0
    %258 = vmatprep.subr.mxu0 0.0
    %259 = vmatpush1.msra.mxu0 0.0
    %260 = vmatprep.subr.mxu0 0.0
    %261 = vmatpush1.msra.mxu0 0.0
    %262 = vmatprep.subr.mxu0 0.0
    %263 = vmatpush1.msra.mxu0 0.0
    %264 = vmatprep.subr.mxu0 0.0
    %265 = vmatpush1.msra.mxu0 0.0
    %266 = vmatprep.subr.mxu0 0.0
    %267 = vmatpush1.msra.mxu0 0.0
    %268 = vmatprep.subr.mxu0 0.0
    %269 = vmatpush1.msra.mxu0 0.0
    %270 = vmatprep.subr.mxu0 0.0
    %271 = vmatpush1.msra.mxu0 0.0
    %272 = vmatprep.subr.mxu0 0.0
    %273 = vmatpush1.msra.mxu0 0.0
    %274 = vmatprep.subr.mxu0 0.0
    %275 = vmatpush1.msra.mxu0 0.0
    %276 = vmatprep.subr.mxu0 0.0
    %277 = vmatpush1.msra.mxu0 0.0
    %278 = vmatprep.subr.mxu0 0.0
    %279 = vmatpush1.msra.mxu0 0.0
    %280 = vmatprep.subr.mxu0 0.0
    %281 = vmatpush1.msra.mxu0 0.0
    %282 = vmatprep.subr.mxu0 0.0
    %283 = vmatpush1.msra.mxu0 0.0
    %284 = vmatprep.subr.mxu0 0.0
    %285 = vmatpush1.msra.mxu0 0.0
    %286 = vmatprep.subr.mxu0 0.0
    %287 = vmatpush1.msra.mxu0 0.0
    %288 = vmatprep.subr.mxu0 0.0
    %289 = vmatpush1.msra.mxu0 0.0
    %290 = vmatprep.subr.mxu0 0.0
    %291 = vmatpush1.msra.mxu0 0.0
    %292 = vmatprep.subr.mxu0 0.0
    %293 = vmatpush1.msra.mxu0 0.0
    %294 = vmatprep.mubr.f32.mxu0 0.0
    %295 = vmatmul.mubr.f32.gmra.mrb[0].mxu0 %v225
    %v296 = vpop.f32.mrb[0].mxu0
    %v297 = vadd.f32 %v221, %v296
    %v298 = vpop.f32.mrb[0].mxu0
    %299 = vmatprep.mubr.f32.mxu0 0.0
    %300 = vmatmul.mubr.f32.gmra.mrb[0].mxu0 %v228
    %v301 = vpop.f32.mrb[0].mxu0
    %v302 = vadd.f32 %v221, %v301
    %v303 = vpop.f32.mrb[0].mxu0
    %304 = vdwg.mxu0
    %v305 = vld [vmem:[%s5] sm:$0xff]
    %v306 = vld [vmem:[%s5 + $0x8] sm:$0xff]
    %v307 = vld [vmem:[%s5 + $0x10] sm:$0xff]
    %v308 = vld [vmem:[%s5 + $0x18] sm:$0xff]
    %v309 = vld [vmem:[%s5 + $0x20] sm:$0xff]
    %v310 = vld [vmem:[%s5 + $0x28] sm:$0xff]
    %v311 = vld [vmem:[%s6] sm:$0x1]
    %312 = vmatprep.subr.mxu0 0.0
    %313 = vmatpush1.msra.mxu0 %v297
    %314 = vmatprep.subr.mxu0 0.0
    %315 = vmatpush1.msra.mxu0 %v302
    %316 = vmatprep.subr.mxu0 0.0
    %317 = vmatpush1.msra.mxu0 0.0
    %318 = vmatprep.subr.mxu0 0.0
    %319 = vmatpush1.msra.mxu0 0.0
    %320 = vmatprep.subr.mxu0 0.0
    %321 = vmatpush1.msra.mxu0 0.0
    %322 = vmatprep.subr.mxu0 0.0
    %323 = vmatpush1.msra.mxu0 0.0
    %324 = vmatprep.subr.mxu0 0.0
    %325 = vmatpush1.msra.mxu0 0.0
    %326 = vmatprep.subr.mxu0 0.0
    %327 = vmatpush1.msra.mxu0 0.0
    %328 = vmatprep.subr.mxu0 0.0
    %329 = vmatpush1.msra.mxu0 0.0
    %330 = vmatprep.subr.mxu0 0.0
    %331 = vmatpush1.msra.mxu0 0.0
    %332 = vmatprep.subr.mxu0 0.0
    %333 = vmatpush1.msra.mxu0 0.0
    %334 = vmatprep.subr.mxu0 0.0
    %335 = vmatpush1.msra.mxu0 0.0
    %336 = vmatprep.subr.mxu0 0.0
    %337 = vmatpush1.msra.mxu0 0.0
    %338 = vmatprep.subr.mxu0 0.0
    %339 = vmatpush1.msra.mxu0 0.0
    %340 = vmatprep.subr.mxu0 0.0
    %341 = vmatpush1.msra.mxu0 0.0
    %342 = vmatprep.subr.mxu0 0.0
    %343 = vmatpush1.msra.mxu0 0.0
    %344 = vmatprep.subr.mxu0 0.0
    %345 = vmatpush1.msra.mxu0 0.0
    %346 = vmatprep.subr.mxu0 0.0
    %347 = vmatpush1.msra.mxu0 0.0
    %348 = vmatprep.subr.mxu0 0.0
    %349 = vmatpush1.msra.mxu0 0.0
    %350 = vmatprep.subr.mxu0 0.0
    %351 = vmatpush1.msra.mxu0 0.0
    %352 = vmatprep.subr.mxu0 0.0
    %353 = vmatpush1.msra.mxu0 0.0
    %354 = vmatprep.subr.mxu0 0.0
    %355 = vmatpush1.msra.mxu0 0.0
    %356 = vmatprep.subr.mxu0 0.0
    %357 = vmatpush1.msra.mxu0 0.0
    %358 = vmatprep.subr.mxu0 0.0
    %359 = vmatpush1.msra.mxu0 0.0
    %360 = vmatprep.subr.mxu0 0.0
    %361 = vmatpush1.msra.mxu0 0.0
    %362 = vmatprep.subr.mxu0 0.0
    %363 = vmatpush1.msra.mxu0 0.0
    %364 = vmatprep.subr.mxu0 0.0
    %365 = vmatpush1.msra.mxu0 0.0
    %366 = vmatprep.subr.mxu0 0.0
    %367 = vmatpush1.msra.mxu0 0.0
    %368 = vmatprep.subr.mxu0 0.0
    %369 = vmatpush1.msra.mxu0 0.0
    %370 = vmatprep.subr.mxu0 0.0
    %371 = vmatpush1.msra.mxu0 0.0
    %372 = vmatprep.subr.mxu0 0.0
    %373 = vmatpush1.msra.mxu0 0.0
    %374 = vmatprep.subr.mxu0 0.0
    %375 = vmatpush1.msra.mxu0 0.0
    %376 = vmatprep.mubr.f32.mxu0 0.0
    %377 = vmatmul.mubr.f32.gmra.mrb[0].mxu0 %v37
    %v378 = vpop.f32.mrb[0].mxu0
    %v379 = vadd.f32 0.0, %v378
    %v380 = vpop.f32.mrb[0].mxu0
    %381 = vmatprep.mubr.f32.mxu0 0.0
    %382 = vmatmul.mubr.f32.gmra.mrb[0].mxu0 %v40
    %v383 = vpop.f32.mrb[0].mxu0
    %v384 = vadd.f32 0.0, %v383
    %v385 = vpop.f32.mrb[0].mxu0
    %386 = vdwg.mxu0
    %387 = vmatprep.subr.mxu0 0.0
    %388 = vmatpush1.msra.mxu0 %v379
    %389 = vmatprep.subr.mxu0 0.0
    %390 = vmatpush1.msra.mxu0 %v384
    %391 = vmatprep.subr.mxu0 0.0
    %392 = vmatpush1.msra.mxu0 0.0
    %393 = vmatprep.subr.mxu0 0.0
    %394 = vmatpush1.msra.mxu0 0.0
    %395 = vmatprep.subr.mxu0 0.0
    %396 = vmatpush1.msra.mxu0 0.0
    %397 = vmatprep.subr.mxu0 0.0
    %398 = vmatpush1.msra.mxu0 0.0
    %399 = vmatprep.subr.mxu0 0.0
    %400 = vmatpush1.msra.mxu0 0.0
    %401 = vmatprep.subr.mxu0 0.0
    %402 = vmatpush1.msra.mxu0 0.0
    %403 = vmatprep.subr.mxu0 0.0
    %404 = vmatpush1.msra.mxu0 0.0
    %405 = vmatprep.subr.mxu0 0.0
    %406 = vmatpush1.msra.mxu0 0.0
    %407 = vmatprep.subr.mxu0 0.0
    %408 = vmatpush1.msra.mxu0 0.0
    %409 = vmatprep.subr.mxu0 0.0
    %410 = vmatpush1.msra.mxu0 0.0
    %411 = vmatprep.subr.mxu0 0.0
    %412 = vmatpush1.msra.mxu0 0.0
    %413 = vmatprep.subr.mxu0 0.0
    %414 = vmatpush1.msra.mxu0 0.0
    %415 = vmatprep.subr.mxu0 0.0
    %416 = vmatpush1.msra.mxu0 0.0
    %417 = vmatprep.subr.mxu0 0.0
    %418 = vmatpush1.msra.mxu0 0.0
    %419 = vmatprep.subr.mxu0 0.0
    %420 = vmatpush1.msra.mxu0 0.0
    %421 = vmatprep.subr.mxu0 0.0
    %422 = vmatpush1.msra.mxu0 0.0
    %423 = vmatprep.subr.mxu0 0.0
    %424 = vmatpush1.msra.mxu0 0.0
    %425 = vmatprep.subr.mxu0 0.0
    %426 = vmatpush1.msra.mxu0 0.0
    %427 = vmatprep.subr.mxu0 0.0
    %428 = vmatpush1.msra.mxu0 0.0
    %429 = vmatprep.subr.mxu0 0.0
    %430 = vmatpush1.msra.mxu0 0.0
    %431 = vmatprep.subr.mxu0 0.0
    %432 = vmatpush1.msra.mxu0 0.0
    %433 = vmatprep.subr.mxu0 0.0
    %434 = vmatpush1.msra.mxu0 0.0
    %435 = vmatprep.subr.mxu0 0.0
    %436 = vmatpush1.msra.mxu0 0.0
    %437 = vmatprep.subr.mxu0 0.0
    %438 = vmatpush1.msra.mxu0 0.0
    %439 = vmatprep.subr.mxu0 0.0
    %440 = vmatpush1.msra.mxu0 0.0
    %441 = vmatprep.subr.mxu0 0.0
    %442 = vmatpush1.msra.mxu0 0.0
    %443 = vmatprep.subr.mxu0 0.0
    %444 = vmatpush1.msra.mxu0 0.0
    %445 = vmatprep.subr.mxu0 0.0
    %446 = vmatpush1.msra.mxu0 0.0
    %447 = vmatprep.subr.mxu0 0.0
    %448 = vmatpush1.msra.mxu0 0.0
    %449 = vmatprep.subr.mxu0 0.0
    %450 = vmatpush1.msra.mxu0 0.0
    %451 = vmatprep.mubr.f32.mxu0 0.0
    %452 = vmatmul.mubr.f32.gmra.mrb[0].mxu0 %v37
    %v453 = vpop.f32.mrb[0].mxu0
    %v454 = vadd.f32 0.0, %v453
    %v455 = vpop.f32.mrb[0].mxu0
    %456 = vmatprep.mubr.f32.mxu0 0.0
    %457 = vmatmul.mubr.f32.gmra.mrb[0].mxu0 %v40
    %v458 = vpop.f32.mrb[0].mxu0
    %v459 = vadd.f32 0.0, %v458
    %v460 = vpop.f32.mrb[0].mxu0
    %461 = vdwg.mxu0
    %v462 = vmul.f32 %v454, 2.0
    %v463 = vmul.f32 %v459, 2.0
    %v464 = vsub.f32 %v462, %v297
    %v465 = vsub.f32 %v463, %v302
    %468 = vrot.lane.b32.xlu0 %v379, 16
    %v469 = vpop.permute.xlu0 %468
    %470 = vrot.lane.b32.xlu0 %v384, 16
    %v471 = vpop.permute.xlu0 %470
    %476 = vrot.lane.b32.xlu0 %v464, 32
    %v477 = vpop.permute.xlu0 %476
    %478 = vrot.lane.b32.xlu0 %v465, 32
    %v479 = vpop.permute.xlu0 %478
    %v482 = vsel %vm35, %v297, %v469
    %v483 = vsel %vm35, %v302, %v471
    %vm484 = vcmask 261120
    %v485 = vsel %vm484, %v482, %v477
    %v486 = vsel %vm484, %v483, %v479
    %v488 = vlaneseq
    %v489 = vshrl.u32 %v488, 7
    %v490 = vsub.s32 0, %v489
    %v491 = vrot.slane %v311, %v490
    %vm493 = vcmask 392192
    %v495 = vsel %vm493, %v485, 0
    %v498 = vsel %vm493, %v486, 0
    %500 = vmatprep.subr.mxu0 0.0
    %501 = vmatpush1.msra.mxu0 %v305
    %502 = vmatprep.subr.mxu0 0.0
    %503 = vmatpush1.msra.mxu0 %v306
    %504 = vmatprep.subr.mxu0 0.0
    %505 = vmatpush1.msra.mxu0 %v307
    %506 = vmatprep.subr.mxu0 0.0
    %507 = vmatpush1.msra.mxu0 %v308
    %508 = vmatprep.subr.mxu0 0.0
    %509 = vmatpush1.msra.mxu0 %v309
    %510 = vmatprep.subr.mxu0 0.0
    %511 = vmatpush1.msra.mxu0 %v310
    %512 = vmatprep.subr.mxu0 0.0
    %513 = vmatpush1.msra.mxu0 0.0
    %514 = vmatprep.subr.mxu0 0.0
    %515 = vmatpush1.msra.mxu0 0.0
    %516 = vmatprep.subr.mxu0 0.0
    %517 = vmatpush1.msra.mxu0 0.0
    %518 = vmatprep.subr.mxu0 0.0
    %519 = vmatpush1.msra.mxu0 0.0
    %520 = vmatprep.subr.mxu0 0.0
    %521 = vmatpush1.msra.mxu0 0.0
    %522 = vmatprep.subr.mxu0 0.0
    %523 = vmatpush1.msra.mxu0 0.0
    %524 = vmatprep.subr.mxu0 0.0
    %525 = vmatpush1.msra.mxu0 0.0
    %526 = vmatprep.subr.mxu0 0.0
    %527 = vmatpush1.msra.mxu0 0.0
    %528 = vmatprep.subr.mxu0 0.0
    %529 = vmatpush1.msra.mxu0 0.0
    %530 = vmatprep.subr.mxu0 0.0
    %531 = vmatpush1.msra.mxu0 0.0
    %532 = vmatprep.subr.mxu0 0.0
    %533 = vmatpush1.msra.mxu0 0.0
    %534 = vmatprep.subr.mxu0 0.0
    %535 = vmatpush1.msra.mxu0 0.0
    %536 = vmatprep.subr.mxu0 0.0
    %537 = vmatpush1.msra.mxu0 0.0
    %538 = vmatprep.subr.mxu0 0.0
    %539 = vmatpush1.msra.mxu0 0.0
    %540 = vmatprep.subr.mxu0 0.0
    %541 = vmatpush1.msra.mxu0 0.0
    %542 = vmatprep.subr.mxu0 0.0
    %543 = vmatpush1.msra.mxu0 0.0
    %544 = vmatprep.subr.mxu0 0.0
    %545 = vmatpush1.msra.mxu0 0.0
    %546 = vmatprep.subr.mxu0 0.0
    %547 = vmatpush1.msra.mxu0 0.0
    %548 = vmatprep.subr.mxu0 0.0
    %549 = vmatpush1.msra.mxu0 0.0
    %550 = vmatprep.subr.mxu0 0.0
    %551 = vmatpush1.msra.mxu0 0.0
    %552 = vmatprep.subr.mxu0 0.0
    %553 = vmatpush1.msra.mxu0 0.0
    %554 = vmatprep.subr.mxu0 0.0
    %555 = vmatpush1.msra.mxu0 0.0
    %556 = vmatprep.subr.mxu0 0.0
    %557 = vmatpush1.msra.mxu0 0.0
    %558 = vmatprep.subr.mxu0 0.0
    %559 = vmatpush1.msra.mxu0 0.0
    %560 = vmatprep.subr.mxu0 0.0
    %561 = vmatpush1.msra.mxu0 0.0
    %562 = vmatprep.subr.mxu0 0.0
    %563 = vmatpush1.msra.mxu0 0.0
    %564 = vmatprep.mubr.f32.mxu0 0.0
    %565 = vmatmul.mubr.f32.gmra.mrb[0].mxu0 %v495
    %v566 = vpop.f32.mrb[0].mxu0
    %v567 = vadd.f32 %v491, %v566
    %v568 = vpop.f32.mrb[0].mxu0
    %569 = vmatprep.mubr.f32.mxu0 0.0
    %570 = vmatmul.mubr.f32.gmra.mrb[0].mxu0 %v498
    %v571 = vpop.f32.mrb[0].mxu0
    %v572 = vadd.f32 %v491, %v571
    %v573 = vpop.f32.mrb[0].mxu0
    %574 = vdwg.mxu0
    %v575 = vmin.f32 %v567, 0.0
    %v576 = vmin.f32 %v572, 0.0
    %vm577 = vcmp.gt.f32.partialorder %v567, 0.0
    %vm578 = vcmp.gt.f32.partialorder %v572, 0.0
    %v579 = vmul.f32 %v575, 1.442695
    %v580 = vpow.pop %v579
    %v581 = vmul.f32 %v576, 1.442695
    %v582 = vpow.pop %v581
    %v583 = vsub.f32 %v580, 1.0
    %v584 = vsub.f32 %v582, 1.0
    %v585 = vsel %vm577, %v567, %v583
    %v586 = vsel %vm578, %v572, %v584
    %v587 = vld [vmem:[%s2] sm:$0xff]
    %v589 = vsel %vm35, %v587, 0
    %591 = vmatprep.subr.mxu0 0.0
    %592 = vmatpush1.msra.mxu0 %v585
    %593 = vmatprep.subr.mxu0 0.0
    %594 = vmatpush1.msra.mxu0 %v586
    %595 = vmatprep.subr.mxu0 0.0
    %596 = vmatpush1.msra.mxu0 0.0
    %597 = vmatprep.subr.mxu0 0.0
    %598 = vmatpush1.msra.mxu0 0.0
    %599 = vmatprep.subr.mxu0 0.0
    %600 = vmatpush1.msra.mxu0 0.0
    %601 = vmatprep.subr.mxu0 0.0
    %602 = vmatpush1.msra.mxu0 0.0
    %603 = vmatprep.subr.mxu0 0.0
    %604 = vmatpush1.msra.mxu0 0.0
    %605 = vmatprep.subr.mxu0 0.0
    %606 = vmatpush1.msra.mxu0 0.0
    %607 = vmatprep.subr.mxu0 0.0
    %608 = vmatpush1.msra.mxu0 0.0
    %609 = vmatprep.subr.mxu0 0.0
    %610 = vmatpush1.msra.mxu0 0.0
    %611 = vmatprep.subr.mxu0 0.0
    %612 = vmatpush1.msra.mxu0 0.0
    %613 = vmatprep.subr.mxu0 0.0
    %614 = vmatpush1.msra.mxu0 0.0
    %615 = vmatprep.subr.mxu0 0.0
    %616 = vmatpush1.msra.mxu0 0.0
    %617 = vmatprep.subr.mxu0 0.0
    %618 = vmatpush1.msra.mxu0 0.0
    %619 = vmatprep.subr.mxu0 0.0
    %620 = vmatpush1.msra.mxu0 0.0
    %621 = vmatprep.subr.mxu0 0.0
    %622 = vmatpush1.msra.mxu0 0.0
    %623 = vmatprep.subr.mxu0 0.0
    %624 = vmatpush1.msra.mxu0 0.0
    %625 = vmatprep.subr.mxu0 0.0
    %626 = vmatpush1.msra.mxu0 0.0
    %627 = vmatprep.subr.mxu0 0.0
    %628 = vmatpush1.msra.mxu0 0.0
    %629 = vmatprep.subr.mxu0 0.0
    %630 = vmatpush1.msra.mxu0 0.0
    %631 = vmatprep.subr.mxu0 0.0
    %632 = vmatpush1.msra.mxu0 0.0
    %633 = vmatprep.subr.mxu0 0.0
    %634 = vmatpush1.msra.mxu0 0.0
    %635 = vmatprep.subr.mxu0 0.0
    %636 = vmatpush1.msra.mxu0 0.0
    %637 = vmatprep.subr.mxu0 0.0
    %638 = vmatpush1.msra.mxu0 0.0
    %639 = vmatprep.subr.mxu0 0.0
    %640 = vmatpush1.msra.mxu0 0.0
    %641 = vmatprep.subr.mxu0 0.0
    %642 = vmatpush1.msra.mxu0 0.0
    %643 = vmatprep.subr.mxu0 0.0
    %644 = vmatpush1.msra.mxu0 0.0
    %645 = vmatprep.subr.mxu0 0.0
    %646 = vmatpush1.msra.mxu0 0.0
    %647 = vmatprep.subr.mxu0 0.0
    %648 = vmatpush1.msra.mxu0 0.0
    %649 = vmatprep.subr.mxu0 0.0
    %650 = vmatpush1.msra.mxu0 0.0
    %651 = vmatprep.subr.mxu0 0.0
    %652 = vmatpush1.msra.mxu0 0.0
    %653 = vmatprep.subr.mxu0 0.0
    %654 = vmatpush1.msra.mxu0 0.0
    %655 = vmatprep.mubr.f32.mxu0 0.0
    %656 = vmatmul.mubr.f32.gmra.mrb[0].mxu0 %v589
    %v657 = vpop.f32.mrb[0].mxu0
    %v658 = vadd.f32 0.0, %v657
    %v659 = vpop.f32.mrb[0].mxu0
    %660 = vdwg.mxu0
    %661 = vst.msk [vmem:[#allocation2] sm:$0xff] %vm35, %v658
    // Predicated region
    $region30: #{tpu_custom_call.1} parent=1 // pred_check
      _
    $region31: #{tpu_custom_call.1} parent=1 // pred_check_branch
      %663 = sbr.rel (0) target = $region33
    $region32: #{tpu_custom_call.1} parent=1 // pred_region
      %s665 = ssub.s32 128, 128
      %666 = vsyncadd [#allocation3], %s665
      %s668 = sshll.u32 [#allocation2], 4
      %s669 = int_to_ptr.vmem [resolvable:$true] %s668
      %671 = dma.vmem_to_hbm [thread:$0]  %s669, 128, %s7, [#allocation3]
    $region33: #{tpu_custom_call.1} parent=1 // pred_fallthru
      _
    // Predicated region
    $region34: #{tpu_custom_call.1} parent=1 // pred_check
      _
    $region35: #{tpu_custom_call.1} parent=1 // pred_check_branch
      %673 = sbr.rel (0) target = $region37
    $region36: #{tpu_custom_call.1} parent=1 // pred_region
      %674 = dma.done [#allocation3], 128
    $region37: #{tpu_custom_call.1} parent=1 // pred_fallthru
      _
    %675 = vsyncpa [#allocation3], 1

</llo_original>
